<compile_context>
chip_gen: v5e
topology: v5e:2x2
jax: 0.10.0
libtpu: 0.0.40
codegen_flags: <defaults>
</compile_context>

<pallas_src>
import functools

import numpy as np
import jax
import jax.numpy as jnp
from jax import lax
from jax.experimental import pallas as pl
from jax.experimental.pallas import tpu as pltpu


def _pre_emphasis_kernel(prev_ref, x_ref, o_ref, *, coef):
    """One (bt, tt) block; prev_ref[:, 0] is the predecessor of column 0."""
    x = x_ref[...]                                         # (bt, tt)
    x_prev = pltpu.roll(x, shift=1, axis=1)                # lane 0 wraps; fixed below
    lane = lax.broadcasted_iota(jnp.int32, x.shape, 1)
    x_prev = jnp.where(lane == 0, prev_ref[:, 0:1], x_prev)
    o_ref[...] = x - coef * x_prev                         # single unmasked store


def _largest_lane_divisor(length, cap):
    """Largest multiple of 128 dividing `length` that is <= cap (0 if none)."""
    m = length // 128
    best = 0
    for d in range(min(m, max(cap // 128, 1)), 0, -1):
        if m % d == 0:
            best = d * 128
            break
    return best


def pre_emphasis(x, coef: float = 0.97, *,
                 t_tile: int = 256 * 1024,
                 block_bytes: int = 8 * 1024 * 1024):
    """y[b, 0, t] = x[b, 0, t] - coef * x[b, 0, t-1], reflect pad at t = 0."""
    assert x.ndim == 3, "The number of dimensions of input tensor must be 3!"
    B, C, T = x.shape
    assert C == 1, "PreEmphasis conv1d has a single input/output channel"
    assert T >= 2, "reflect pad requires at least 2 samples"
    itemsize = jnp.dtype(x.dtype).itemsize
    x2 = x.reshape(B, T)

    # ---- sublane repack for tiny B: stack k chunks of each row (free reshape)
    k = 8 // B if (B < 8 and 8 % B == 0) else 1
    R = B * k
    bt = 8 if R % 8 == 0 else R          # full-dim block is exempt from /8 rule

    # ---- lane-tile selection: fill the block budget; prefer a divisor of the
    #      row length so no wrapper-side pad / output-slice pass is needed.
    tt_cap = max(128, (block_bytes // (bt * itemsize)) // 128 * 128)
    row_len = -(-T // k)                                   # ceil(T / k)
    tt0 = min(t_tile, tt_cap, -(-row_len // 128) * 128)
    tt0 = max(128, (tt0 // 128) * 128)

    tt_div = _largest_lane_divisor(T // k, tt0) if T % (128 * k) == 0 else 0
    if tt_div >= max(128, tt0 // 8):
        tt, L = tt_div, T // k                             # no pad, no slice
    else:
        tt = tt0                                            # pad fallback
        L = -(-row_len // tt) * tt
    T_work = k * L

    xw = x2 if T_work == T else jnp.pad(x2, ((0, 0), (0, T_work - T)))
    slab = xw.reshape(R, L)            # row r = b*k+c holds x[b, c*L:(c+1)*L]
    nT = L // tt

    # grow bt (multiples of 8 dividing R) toward the block budget, but keep at
    # least 2 grid blocks so both v7x TensorCores have work.
    if R % 8 == 0:
        while (R % (bt * 2) == 0
               and bt * 2 * tt * itemsize <= block_bytes
               and (R // (bt * 2)) * nT >= 2):
            bt *= 2

    # ---- per-(row, T-tile) predecessor of the tile's first sample (tiny).
    #      chunk c == 0 -> reflect value x[b, 1]; chunk c > 0 -> last sample of
    #      the previous chunk; T-tile j > 0 -> last sample of previous T-tile.
    c_idx = jnp.asarray(np.arange(R) % k)
    seed = jnp.where(c_idx == 0, slab[:, 1], jnp.roll(slab[:, L - 1], 1))
    p_rest = slab[:, tt - 1::tt][:, :nT - 1]
    prev = jnp.concatenate([seed[:, None], p_rest], axis=1)        # (R, nT)
    prev_rep = jnp.broadcast_to(prev[:, :, None], (R, nT, 128)).reshape(R, nT * 128)

    grid = (R // bt, nT)
    y_slab = pl.pallas_call(
        functools.partial(_pre_emphasis_kernel, coef=coef),
        out_shape=jax.ShapeDtypeStruct((R, L), x.dtype),
        grid_spec=pltpu.PrefetchScalarGridSpec(
            num_scalar_prefetch=0,
            grid=grid,
            in_specs=[pl.BlockSpec((bt, 128), lambda i, j: (i, j)),   # predecessors
                      pl.BlockSpec((bt, tt), lambda i, j: (i, j))],   # waveform
            out_specs=pl.BlockSpec((bt, tt), lambda i, j: (i, j)),
        ),
        compiler_params=pltpu.CompilerParams(
            dimension_semantics=("parallel", "parallel"),
            vmem_limit_bytes=40 * 1024 * 1024,
        ),
        cost_estimate=pl.CostEstimate(
            flops=2 * R * L,
            transcendentals=0,
            bytes_accessed=itemsize * (2 * R * L + R * nT * 128),
        ),
    )(prev_rep, slab)

    y = y_slab.reshape(B, T_work)
    if T_work != T:
        y = y[:, :T]
    return y.reshape(B, 1, T)


if __name__ == "__main__":
    coef = 0.97  # registered buffer [-coef, 1.0] fully determined by coef
    key = jax.random.PRNGKey(0)

    def reference(x, coef):
        x_pad = jnp.concatenate([x[:, :, 1:2], x], axis=-1)
        return x_pad[:, :, 1:] - coef * x_pad[:, :, :-1]

    # 1) small module-consistent shape (B, 1, T): pad fallback + sublane repack
    B, C, T = 2, 1, 16
    x = jax.random.normal(key, (B, C, T), dtype=jnp.float32)
    y = jax.block_until_ready(pre_emphasis(x, coef=coef))
    assert y.shape == (B, C, T)
    assert jnp.allclose(y, reference(x, coef), atol=1e-6), "mismatch vs reference"

    # 2) multi-T-tile predecessor path with repack (k=4, 2 lane tiles)
    x2 = jax.random.normal(jax.random.PRNGKey(0), (2, 1, 640), dtype=jnp.float32)
    y2 = jax.block_until_ready(pre_emphasis(x2, coef=coef, t_tile=128))
    assert jnp.allclose(y2, reference(x2, coef), atol=1e-6), "multi-tile mismatch"

    # 3) aligned-T no-pad / divisor path (k=1, 4 lane tiles, no wrapper copies)
    x3 = jax.random.normal(jax.random.PRNGKey(0), (8, 1, 1024), dtype=jnp.float32)
    y3 = jax.block_until_ready(pre_emphasis(x3, coef=coef, t_tile=256))
    assert jnp.allclose(y3, reference(x3, coef), atol=1e-6), "no-pad path mismatch"

    print("KERNEL_OK")
</pallas_src>

<mosaic_0001>
module attributes {stable_mosaic.version = 11 : i64} {
  func.func @_pre_emphasis_kernel(%arg0: i32, %arg1: i32, %arg2: memref<8x128xf32, #tpu.memory_space<vmem>>, %arg3: memref<8x128xf32, #tpu.memory_space<vmem>>, %arg4: memref<8x128xf32, #tpu.memory_space<vmem>>) attributes {dimension_semantics = [#tpu.dimension_semantics<parallel>, #tpu.dimension_semantics<parallel>], iteration_bounds = array<i64: 1, 1>, scalar_prefetch = 0 : i64, scratch_operands = 0 : i64, tpu.core_type = #tpu.core_type<tc>, window_params = [{transform_indices = @transform_0, window_bounds = array<i64: 8, 128>}, {transform_indices = @transform_1, window_bounds = array<i64: 8, 128>}, {transform_indices = @transform_2, window_bounds = array<i64: 8, 128>}]} {
    %c0 = arith.constant 0 : index
    %c0_0 = arith.constant 0 : index
    %0 = vector.load %arg3[%c0, %c0_0] : memref<8x128xf32, #tpu.memory_space<vmem>>, vector<8x128xf32>
    %c1_i32 = arith.constant 1 : i32
    %1 = tpu.dynamic_rotate %0 by %c1_i32 dim 1 : vector<8x128xf32>, i32 -> vector<8x128xf32>
    %2 = tpu.iota {dimensions = array<i32: 1>} : vector<8x128xi32>
    %c0_i32 = arith.constant 0 : i32
    %3 = vector.broadcast %c0_i32 : i32 to vector<8x128xi32>
    %4 = arith.cmpi eq, %2, %3 : vector<8x128xi32>
    %c0_1 = arith.constant 0 : index
    %c0_2 = arith.constant 0 : index
    %5 = vector.load %arg2[%c0_1, %c0_2] : memref<8x128xf32, #tpu.memory_space<vmem>>, vector<8x1xf32>
    %6 = vector.shape_cast %5 : vector<8x1xf32> to vector<8x1xf32>
    %7 = vector.broadcast %6 : vector<8x1xf32> to vector<8x128xf32>
    %8 = arith.select %4, %7, %1 : vector<8x128xi1>, vector<8x128xf32>
    %cst = arith.constant 9.700000e-01 : f32
    %9 = vector.broadcast %cst : f32 to vector<8x128xf32>
    %10 = arith.mulf %9, %8 : vector<8x128xf32>
    %11 = arith.subf %0, %10 : vector<8x128xf32>
    %c0_3 = arith.constant 0 : index
    %c0_4 = arith.constant 0 : index
    %12 = vector.load %arg4[%c0_3, %c0_4] : memref<8x128xf32, #tpu.memory_space<vmem>>, vector<8x128xf32>
    tpu.vector_store %arg4[%c0_3, %c0_4], %11 {strides = array<i32>} : memref<8x128xf32, #tpu.memory_space<vmem>>, vector<8x128xf32>,
    return
  }
  func.func @transform_0(%arg0: i32, %arg1: i32) -> (i32, i32) {
    %c0_i32 = arith.constant 0 : i32
    return %arg0, %arg1 : i32, i32
  }
  func.func @transform_1(%arg0: i32, %arg1: i32) -> (i32, i32) {
    %c0_i32 = arith.constant 0 : i32
    return %arg0, %arg1 : i32, i32
  }
  func.func @transform_2(%arg0: i32, %arg1: i32) -> (i32, i32) {
    %c0_i32 = arith.constant 0 : i32
    return %arg0, %arg1 : i32, i32
  }
}

</mosaic_0001>

<llo_original>
// kernel: tpu_custom_call.1
$region0: #{tpu_custom_call.1}
  #allocation0 [shape = 'u32[]', space=smem, size = 0x4, offset = 0x4, fixed_abs, tag = 'smem constant byte address 0x4 - core index']
  #allocation1 [shape = 'u32[72,128]{1,0:T(1,128)}', space=vmem, size = 0x9000, scoped, tag = 'internal scratch']
  %s0 = inlined_call_operand.hbm [shape: f32[8,128], index: 0, kind: input, shape index: {}]
  %s1 = inlined_call_operand.hbm [shape: f32[8,128], index: 1, kind: input, shape index: {}]
  %s2 = inlined_call_operand.hbm [shape: f32[8,128], index: 2, kind: output, shape index: {}]
  %s3 = sld [smem:[#allocation0]]
  $region26: #{tpu_custom_call.1} parent=0
    _
  %s5 = ssub.s32 1, %s3
  %s6 = scalar_select 0, %s5, %s3
  $region1: #{tpu_custom_call.1} parent=0
    #allocation2 [shape = 'u8[4096]{0}', space=vmem, size = 0x1000, scoped, tag = 'input window, operand 0, single buffered']
    #allocation3 [shape = 's32[1]{0}', space=sflag, size = 0x4, scoped, tag = 'scoped memory for tpu_custom_call.1']
    #allocation4 [shape = 's32[1]{0}', space=sflag, size = 0x4, scoped, tag = 'scoped memory for tpu_custom_call.1']
    #allocation5 [shape = 'u8[4096]{0}', space=vmem, size = 0x1000, scoped, tag = 'input window, operand 1, single buffered']
    #allocation6 [shape = 's32[1]{0}', space=sflag, size = 0x4, scoped, tag = 'scoped memory for tpu_custom_call.1']
    #allocation7 [shape = 'u8[4096]{0}', space=vmem, size = 0x1000, scoped, tag = 'output window, operand 0, single buffered']
    %7 = vsyncpa [#allocation3], 0
    %8 = vsyncpa [#allocation6], 0
    %9 = vsyncpa [#allocation4], 0
    // Predicated region
    $region2: #{tpu_custom_call.1} parent=1 // pred_check
      _
    $region3: #{tpu_custom_call.1} parent=1 // pred_check_branch
      %11 = sbr.rel (0) target = $region5
    $region4: #{tpu_custom_call.1} parent=1 // pred_region
      %13 = vsyncadd [#allocation3], 0
      %s15 = sshll.u32 %s0, 4
      %s16 = int_to_ptr.hbm [resolvable:$true] %s15
      %s17 = sshll.u32 [#allocation2], 4
      %s18 = int_to_ptr.vmem [resolvable:$true] %s17
      %20 = dma.hbm_to_vmem [thread:$0]  %s16, 128, %s18, [#allocation3]
    $region5: #{tpu_custom_call.1} parent=1 // pred_fallthru
      _
    // Predicated region
    $region6: #{tpu_custom_call.1} parent=1 // pred_check
      _
    $region7: #{tpu_custom_call.1} parent=1 // pred_check_branch
      %22 = sbr.rel (0) target = $region9
    $region8: #{tpu_custom_call.1} parent=1 // pred_region
      %24 = vsyncadd [#allocation6], 0
      %s26 = sshll.u32 %s1, 4
      %s27 = int_to_ptr.hbm [resolvable:$true] %s26
      %s28 = sshll.u32 [#allocation5], 4
      %s29 = int_to_ptr.vmem [resolvable:$true] %s28
      %31 = dma.hbm_to_vmem [thread:$0]  %s27, 128, %s29, [#allocation6]
    $region9: #{tpu_custom_call.1} parent=1 // pred_fallthru
      _
    // Predicated region
    $region10: #{tpu_custom_call.1} parent=1 // pred_check
      _
    $region11: #{tpu_custom_call.1} parent=1 // pred_check_branch
      %33 = sbr.rel (0) target = $region13
    $region12: #{tpu_custom_call.1} parent=1 // pred_region
      %35 = dma.done [#allocation3], 128
    $region13: #{tpu_custom_call.1} parent=1 // pred_fallthru
      _
    // Predicated region
    $region14: #{tpu_custom_call.1} parent=1 // pred_check
      _
    $region15: #{tpu_custom_call.1} parent=1 // pred_check_branch
      %37 = sbr.rel (0) target = $region17
    $region16: #{tpu_custom_call.1} parent=1 // pred_region
      %39 = dma.done [#allocation6], 128
    $region17: #{tpu_custom_call.1} parent=1 // pred_fallthru
      _
    %v40 = vld [vmem:[#allocation5] sm:$0xff]
    %41 = vrot.lane.b32.xlu0 %v40, 1
    %v42 = vpop.permute.xlu0 %41
    %v43 = vlaneseq
    %v44 = vand.u32 %v43, 127
    %vm45 = vcmp.eq.s32.totalorder %v44, 0
    %v46 = vld [vmem:[#allocation2] sm:$0xff]
    %48 = vset.pattern.permute.xlu0 0
    %49 = vperm.xlu0 %48, %v46
    %v50 = vpop.permute.xlu0 %49
    %v52 = vsel %vm45, %v50, %v42
    %v53 = vmul.f32 %v52, 0.97
    %v54 = vsub.f32 %v40, %v53
    %55 = vst [vmem:[#allocation7] sm:$0xff] %v54
    // Predicated region
    $region18: #{tpu_custom_call.1} parent=1 // pred_check
      _
    $region19: #{tpu_custom_call.1} parent=1 // pred_check_branch
      %57 = sbr.rel (0) target = $region21
    $region20: #{tpu_custom_call.1} parent=1 // pred_region
      %59 = vsyncadd [#allocation4], 0
      %s61 = sshll.u32 [#allocation7], 4
      %s62 = int_to_ptr.vmem [resolvable:$true] %s61
      %s63 = sshll.u32 %s2, 4
      %s64 = int_to_ptr.hbm [resolvable:$true] %s63
      %66 = dma.vmem_to_hbm [thread:$0]  %s62, 128, %s64, [#allocation4]
    $region21: #{tpu_custom_call.1} parent=1 // pred_fallthru
      _
    // Predicated region
    $region22: #{tpu_custom_call.1} parent=1 // pred_check
      _
    $region23: #{tpu_custom_call.1} parent=1 // pred_check_branch
      %68 = sbr.rel (0) target = $region25
    $region24: #{tpu_custom_call.1} parent=1 // pred_region
      %70 = dma.done [#allocation4], 128
    $region25: #{tpu_custom_call.1} parent=1 // pred_fallthru
      _
    %71 = vsyncpa [#allocation3], 1
    %72 = vsyncpa [#allocation6], 1
    %73 = vsyncpa [#allocation4], 1

</llo_original>
